<compile_context>
chip_gen: v7x
topology: tpu7x:2x2x1
jax: 0.10.0
libtpu: 0.0.40
codegen_flags: <defaults>
</compile_context>

<pallas_src>
import jax
import jax.numpy as jnp
import numpy as np
from jax.experimental import pallas as pl
from jax.experimental.pallas import tpu as pltpu


def _upsample_kernel(feats_ref, out_ref):
    # feats_ref: VMEM (Tp, C)    -- one tile of parent rows
    # out_ref:   VMEM (Tp, 8*C)  -- each parent row replicated 8x along lanes
    x = feats_ref[...]
    out_ref[...] = jnp.concatenate([x, x, x, x, x, x, x, x], axis=-1)


def _choose_tile_rows(n_rows: int, n_ch: int, itemsize: int) -> int:
    """Pick parents-per-step: as large as possible under a VMEM budget,
    multiple of the dtype sublane packing, capped at 1024."""
    row_align = max(8, 32 // itemsize)          # 8 f32 / 16 bf16 / 32 int8
    n_aligned = ((n_rows + row_align - 1) // row_align) * row_align
    # per parent row bytes in flight: C (input) + 8*C (output); budget 8 MiB
    # per single buffer => ~16 MiB double-buffered, under the 32 MiB default
    # scoped VMEM limit on v5e/v6e/v7x.
    budget = 8 * 1024 * 1024
    tp = budget // (9 * n_ch * itemsize)
    tp = max(row_align, min(1024, tp, n_aligned))
    tp = (tp // row_align) * row_align
    return tp


def sparse_upsample_gather(feats: jax.Array) -> jax.Array:
    """new_feats = feats[repeat(arange(N), 8)], as a streaming Pallas broadcast."""
    N, C = feats.shape
    itemsize = feats.dtype.itemsize
    tp = _choose_tile_rows(N, C, itemsize)

    # Pad rows so the tile divides evenly (padded rows are dropped at the end).
    Np = ((N + tp - 1) // tp) * tp
    x = feats if Np == N else jnp.pad(feats, ((0, Np - N), (0, 0)))

    out_packed = pl.pallas_call(
        _upsample_kernel,
        out_shape=jax.ShapeDtypeStruct((Np, 8 * C), feats.dtype),
        grid=(Np // tp,),
        in_specs=[pl.BlockSpec((tp, C), lambda i: (i, 0))],
        out_specs=pl.BlockSpec((tp, 8 * C), lambda i: (i, 0)),
        compiler_params=pltpu.CompilerParams(
            dimension_semantics=("parallel",)),   # lets v7x megacore split tiles
    )(x)

    # (Np, 8*C) -> (8*Np, C): row-major reshape, child j of parent n at row 8n+j.
    out = out_packed.reshape(8 * Np, C)
    return out if Np == N else out[: 8 * N]


def sparse_upsample(feats: jax.Array, coords: jax.Array, factor: int = 2):
    """JAX equivalent of SparseUpsample.forward.

    Returns (new_feats, new_coords).  The PyTorch module reads new_coords / idx
    from the SparseTensor's spatial cache; here that cache is materialized
    deterministically (children in z-fastest order, parent-major), which matches
    the feats layout produced by sparse_upsample_gather.
    """
    assert factor == 2
    DIM = coords.shape[-1] - 1
    assert DIM == 3
    N = coords.shape[0]

    # 8 child offsets (dx, dy, dz) in {0,1}^3, z fastest (child j = 4dx+2dy+dz).
    offs = jnp.stack(
        jnp.meshgrid(jnp.arange(2), jnp.arange(2), jnp.arange(2), indexing="ij"),
        axis=-1,
    ).reshape(8, 3).astype(coords.dtype)

    b = jnp.repeat(coords[:, :1], 8, axis=0)                                  # (8N, 1)
    xyz = jnp.repeat(coords[:, 1:] * factor, 8, axis=0) + jnp.tile(offs, (N, 1))
    new_coords = jnp.concatenate([b, xyz], axis=-1)                           # (8N, 4)

    new_feats = sparse_upsample_gather(feats)                                 # (8N, C)
    # TODO(synk): `out.scale` / `out.spatial_cache` / `input.shape` are Python
    # bookkeeping on the SparseTensor wrapper, no tensor compute to port.
    return new_feats, new_coords


if __name__ == "__main__":
    key = jax.random.PRNGKey(0)
    k_feat, k_coord, k_batch = jax.random.split(key, 3)

    N, C = 16, 32  # small sparse tensor: 16 active voxels, 32 channels
    feats = jax.random.normal(k_feat, (N, C), dtype=jnp.float32)
    xyz = jax.random.randint(k_coord, (N, 3), 0, 16, dtype=jnp.int32)
    batch = jax.random.randint(k_batch, (N, 1), 0, 2, dtype=jnp.int32)
    coords = jnp.concatenate([batch, xyz], axis=-1)  # (N, 4) = (b, x, y, z)

    new_feats, new_coords = sparse_upsample(feats, coords, factor=2)
    jax.block_until_ready((new_feats, new_coords))

    # Reference check against plain-JAX semantics of `feats[idx]`.
    idx_ref = jnp.repeat(jnp.arange(N, dtype=jnp.int32), 8)
    ref = feats[idx_ref]
    np.testing.assert_allclose(np.asarray(new_feats), np.asarray(ref), rtol=0, atol=0)
    assert new_feats.shape == (8 * N, C)
    assert new_coords.shape == (8 * N, 4)

    # Larger, non-divisible shape to exercise padding + multi-step grid.
    N2, C2 = 1000, 64
    feats2 = jax.random.normal(jax.random.PRNGKey(1), (N2, C2), dtype=jnp.float32)
    up2 = sparse_upsample_gather(feats2)
    jax.block_until_ready(up2)
    ref2 = feats2[jnp.repeat(jnp.arange(N2, dtype=jnp.int32), 8)]
    np.testing.assert_allclose(np.asarray(up2), np.asarray(ref2), rtol=0, atol=0)

    print("KERNEL_OK")
</pallas_src>

<mosaic_0001>
module attributes {stable_mosaic.version = 11 : i64} {
  func.func @_upsample_kernel(%arg0: i32, %arg1: memref<16x32xf32, #tpu.memory_space<vmem>>, %arg2: memref<16x256xf32, #tpu.memory_space<vmem>>) attributes {dimension_semantics = [#tpu.dimension_semantics<parallel>], iteration_bounds = array<i64: 1>, scalar_prefetch = 0 : i64, scratch_operands = 0 : i64, tpu.core_type = #tpu.core_type<tc>, window_params = [{transform_indices = @transform_0, window_bounds = array<i64: 16, 32>}, {transform_indices = @transform_1, window_bounds = array<i64: 16, 256>}]} {
    %c0 = arith.constant 0 : index
    %c0_0 = arith.constant 0 : index
    %0 = vector.load %arg1[%c0, %c0_0] : memref<16x32xf32, #tpu.memory_space<vmem>>, vector<16x32xf32>
    %1 = tpu.concatenate %0, %0, %0, %0, %0, %0, %0, %0 in 1 : vector<16x32xf32>, vector<16x32xf32>, vector<16x32xf32>, vector<16x32xf32>, vector<16x32xf32>, vector<16x32xf32>, vector<16x32xf32>, vector<16x32xf32> -> vector<16x256xf32>
    %c0_1 = arith.constant 0 : index
    %c0_2 = arith.constant 0 : index
    %2 = vector.load %arg2[%c0_1, %c0_2] : memref<16x256xf32, #tpu.memory_space<vmem>>, vector<16x256xf32>
    tpu.vector_store %arg2[%c0_1, %c0_2], %1 {strides = array<i32>} : memref<16x256xf32, #tpu.memory_space<vmem>>, vector<16x256xf32>,
    return
  }
  func.func @transform_0(%arg0: i32) -> (i32, i32) {
    %c0_i32 = arith.constant 0 : i32
    %c0_i32_0 = arith.constant 0 : i32
    return %arg0, %c0_i32 : i32, i32
  }
  func.func @transform_1(%arg0: i32) -> (i32, i32) {
    %c0_i32 = arith.constant 0 : i32
    %c0_i32_0 = arith.constant 0 : i32
    return %arg0, %c0_i32 : i32, i32
  }
}

</mosaic_0001>

<llo_original>
// kernel: tpu_custom_call.1
$region0: #{tpu_custom_call.1}
  #allocation0 [shape = 'u32[]', space=smem, size = 0x4, offset = 0x4, fixed_abs, tag = 'smem constant byte address 0x4 - core index']
  #allocation1 [shape = 'u32[144,128]{1,0:T(1,128)}', space=vmem, size = 0x12000, scoped, tag = 'internal scratch']
  %s0 = inlined_call_operand.hbm [shape: f32[16,32], index: 0, kind: input, shape index: {}]
  %s1 = inlined_call_operand.hbm [shape: f32[16,256], index: 1, kind: output, shape index: {}]
  %s2 = sld [smem:[#allocation0]]
  $region18: #{tpu_custom_call.1} parent=0
    _
  %s4 = ssub.s32 1, %s2
  %s5 = scalar_select 0, %s4, %s2
  $region1: #{tpu_custom_call.1} parent=0
    #allocation2 [shape = 'u8[8192]{0}', space=vmem, size = 0x2000, scoped, tag = 'input window, operand 0, single buffered']
    #allocation3 [shape = 's32[1]{0}', space=sflag, size = 0x4, scoped, tag = 'scoped memory for tpu_custom_call.1']
    #allocation4 [shape = 's32[1]{0}', space=sflag, size = 0x4, scoped, tag = 'scoped memory for tpu_custom_call.1']
    #allocation5 [shape = 'u8[16384]{0}', space=vmem, size = 0x4000, scoped, tag = 'output window, operand 0, single buffered']
    %6 = vsyncpa [#allocation3], 0
    %7 = vsyncpa [#allocation4], 0
    // Predicated region
    $region2: #{tpu_custom_call.1} parent=1 // pred_check
      _
    $region3: #{tpu_custom_call.1} parent=1 // pred_check_branch
      %9 = sbr.rel (0) target = $region5
    $region4: #{tpu_custom_call.1} parent=1 // pred_region
      %s11 = ssub.s32 256, 256
      %12 = vsyncadd [#allocation3], %s11
      %s13 = sshll.u32 [#allocation2], 4
      %s14 = int_to_ptr.vmem [resolvable:$true] %s13
      %19 = dma.hbm_to_vmem [thread:$0]  %s0, 256, %s14, [#allocation3], 128, 128, 8
    $region5: #{tpu_custom_call.1} parent=1 // pred_fallthru
      _
    // Predicated region
    $region6: #{tpu_custom_call.1} parent=1 // pred_check
      _
    $region7: #{tpu_custom_call.1} parent=1 // pred_check_branch
      %21 = sbr.rel (0) target = $region9
    $region8: #{tpu_custom_call.1} parent=1 // pred_region
      %22 = dma.done [#allocation3], 256
    $region9: #{tpu_custom_call.1} parent=1 // pred_fallthru
      _
    %v23 = vld [vmem:[#allocation2] sm:$0xff]
    %v24 = vld [vmem:[#allocation2 + $0x8] sm:$0xff]
    %27 = vrot.lane.b32.xlu0 %v23, 32
    %v28 = vpop.permute.xlu0 %27
    %29 = vrot.lane.b32.xlu0 %v24, 32
    %v30 = vpop.permute.xlu0 %29
    %33 = vrot.lane.b32.xlu0 %v23, 64
    %v34 = vpop.permute.xlu0 %33
    %35 = vrot.lane.b32.xlu0 %v24, 64
    %v36 = vpop.permute.xlu0 %35
    %39 = vrot.lane.b32.xlu0 %v23, 96
    %v40 = vpop.permute.xlu0 %39
    %41 = vrot.lane.b32.xlu0 %v24, 96
    %v42 = vpop.permute.xlu0 %41
    %vm45 = vcmask 261120
    %v46 = vsel %vm45, %v23, %v28
    %v47 = vsel %vm45, %v24, %v30
    %vm48 = vcmask 523264
    %v49 = vsel %vm48, %v46, %v34
    %v50 = vsel %vm48, %v47, %v36
    %vm51 = vcmask 785408
    %v52 = vsel %vm51, %v49, %v40
    %v53 = vsel %vm51, %v50, %v42
    %54 = vst [vmem:[#allocation5] sm:$0xff] %v52
    %55 = vst [vmem:[#allocation5 + $0x8] sm:$0xff] %v52
    %56 = vst [vmem:[#allocation5 + $0x10] sm:$0xff] %v53
    %57 = vst [vmem:[#allocation5 + $0x18] sm:$0xff] %v53
    // Predicated region
    $region10: #{tpu_custom_call.1} parent=1 // pred_check
      _
    $region11: #{tpu_custom_call.1} parent=1 // pred_check_branch
      %59 = sbr.rel (0) target = $region13
    $region12: #{tpu_custom_call.1} parent=1 // pred_region
      %s61 = ssub.s32 512, 512
      %62 = vsyncadd [#allocation4], %s61
      %s63 = sshll.u32 [#allocation5], 4
      %s64 = int_to_ptr.vmem [resolvable:$true] %s63
      %69 = dma.vmem_to_hbm [thread:$0]  %s64, 512, %s1, [#allocation4], 256, 256, 16
    $region13: #{tpu_custom_call.1} parent=1 // pred_fallthru
      _
    // Predicated region
    $region14: #{tpu_custom_call.1} parent=1 // pred_check
      _
    $region15: #{tpu_custom_call.1} parent=1 // pred_check_branch
      %71 = sbr.rel (0) target = $region17
    $region16: #{tpu_custom_call.1} parent=1 // pred_region
      %72 = dma.done [#allocation4], 512
    $region17: #{tpu_custom_call.1} parent=1 // pred_fallthru
      _
    %73 = vsyncpa [#allocation3], 1
    %74 = vsyncpa [#allocation4], 1

</llo_original>
